<compile_context>
chip_gen: v7x
topology: tpu7x:2x2x1
jax: 0.10.0
libtpu: 0.0.40
codegen_flags: <defaults>
</compile_context>

<pallas_src>
import functools

import jax
import jax.numpy as jnp
import numpy as np
from jax.experimental import pallas as pl
from jax.experimental.pallas import tpu as pltpu


# ----------------------------------------------------------------------------
# Activations (pure jnp — usable both inside the kernel and in the reference).
# ----------------------------------------------------------------------------
def _apply_act(x, act_fn):
    if act_fn is None:
        return x
    act_fn = act_fn.lower()
    if act_fn in ("silu", "swish"):
        return x * jax.nn.sigmoid(x)            # sigmoid -> EUP slot
    if act_fn == "relu":
        return jnp.maximum(x, 0.0)
    if act_fn == "gelu":                        # torch default GELU is exact erf
        return 0.5 * x * (1.0 + jax.lax.erf(x * np.float32(1.0 / np.sqrt(2.0))))
    if act_fn == "mish":
        return x * jnp.tanh(jax.nn.softplus(x))
    raise ValueError(f"Unsupported activation function: {act_fn}")


# ----------------------------------------------------------------------------
# Kernels: two bf16 MXU matmuls with f32 accumulation; f32 bias/activation.
# ----------------------------------------------------------------------------
def _te_kernel(sample_ref, w1_ref, b1_ref, w2_ref, b2_ref, out_ref,
               *, act_fn, post_act_fn):
    x = sample_ref[...].astype(w1_ref.dtype)
    h = jnp.dot(x, w1_ref[...], preferred_element_type=jnp.float32)
    h = _apply_act(h + b1_ref[...].astype(jnp.float32), act_fn)
    o = jnp.dot(h.astype(w2_ref.dtype), w2_ref[...],
                preferred_element_type=jnp.float32)
    o = o + b2_ref[...].astype(jnp.float32)
    if post_act_fn is not None:
        o = _apply_act(o, post_act_fn)
    out_ref[...] = o.astype(out_ref.dtype)


def _te_cond_kernel(sample_ref, cond_ref, wc_ref, w1_ref, b1_ref, w2_ref,
                    b2_ref, out_ref, *, act_fn, post_act_fn):
    # sample = sample + condition @ Wc   (cond_proj has no bias)
    x = sample_ref[...].astype(jnp.float32) + jnp.dot(
        cond_ref[...].astype(wc_ref.dtype), wc_ref[...],
        preferred_element_type=jnp.float32)
    x = x.astype(w1_ref.dtype)
    h = jnp.dot(x, w1_ref[...], preferred_element_type=jnp.float32)
    h = _apply_act(h + b1_ref[...].astype(jnp.float32), act_fn)
    o = jnp.dot(h.astype(w2_ref.dtype), w2_ref[...],
                preferred_element_type=jnp.float32)
    o = o + b2_ref[...].astype(jnp.float32)
    if post_act_fn is not None:
        o = _apply_act(o, post_act_fn)
    out_ref[...] = o.astype(out_ref.dtype)


# ----------------------------------------------------------------------------
# Helpers
# ----------------------------------------------------------------------------
def _round_up(x, m):
    return (x + m - 1) // m * m


def _num_tensorcores():
    """Best-effort TensorCore count per device (2 on v7x); falls back to 1."""
    try:
        dev = jax.devices()[0]
        for attr in ("num_cores", "core_count", "num_tensorcores"):
            v = getattr(dev, attr, None)
            if isinstance(v, int) and v > 0:
                return v
    except Exception:
        pass
    return 1


def prepare_params(params, weight_dtype=jnp.bfloat16):
    """Cast MXU weights to `weight_dtype` (bf16 by default); keep biases f32."""
    out = dict(params)
    for k in ("w1", "w2", "wc"):
        if k in out and out[k] is not None:
            out[k] = out[k].astype(weight_dtype)
    for k in ("b1", "b2"):
        if k in out and out[k] is not None:
            out[k] = out[k].astype(jnp.float32)
    return out


def _bspec(shape, index_map, mode=None):
    if mode is None:
        return pl.BlockSpec(shape, index_map)
    return pl.BlockSpec(shape, index_map, pipeline_mode=mode)


# ----------------------------------------------------------------------------
# Wrapper
# ----------------------------------------------------------------------------
def timestep_embedding(sample, params, *, act_fn="silu", post_act_fn=None,
                       condition=None, block_b=256, out_splits=None):
    """Pallas TimestepEmbedding forward.

    params:
      w1 (Cin, H), b1 (1, H), w2 (H, Dout), b2 (1, Dout),
      optional wc (Ccond, Cin) when `condition` is given.
    Linear weights are stored as (in, out) == torch Linear.weight.T
    (ideally in bf16 via `prepare_params`).
    """
    B, Cin = sample.shape
    H = params["w1"].shape[1]
    Dout = params["w2"].shape[1]

    # ---- batch tiling: whole (8-aligned) batch block per grid step ----------
    if B <= block_b:
        bb = _round_up(max(B, 8), 8)
    else:
        bb = _round_up(int(block_b), 8)
    pB = _round_up(B, bb)
    if pB != B:                       # pad only when strictly necessary
        sample = jnp.pad(sample, ((0, pB - B), (0, 0)))
        if condition is not None:
            condition = jnp.pad(condition, ((0, pB - B), (0, 0)))

    # ---- optional Dout split so both v7x TensorCores get work ---------------
    if out_splits is None:
        out_splits = 2 if (_num_tensorcores() >= 2 and Dout % 256 == 0) else 1
    out_splits = max(1, int(out_splits))
    if Dout % (out_splits * 128) != 0:
        out_splits = 1
    bout = Dout // out_splits

    grid = (pB // bb, out_splits)
    out_dtype = sample.dtype

    def build(single_buffer_weights):
        once = pl.Buffered(1) if single_buffer_weights else None
        # w2/b2 are only grid-invariant when Dout is not split.
        w2_mode = once if out_splits == 1 else None

        sample_spec = _bspec((bb, Cin), lambda i, j: (i, 0))
        w1_spec = _bspec((Cin, H), lambda i, j: (0, 0), once)
        b1_spec = _bspec((1, H), lambda i, j: (0, 0), once)
        w2_spec = _bspec((H, bout), lambda i, j: (0, j), w2_mode)
        b2_spec = _bspec((1, bout), lambda i, j: (0, j), w2_mode)
        out_spec = _bspec((bb, bout), lambda i, j: (i, j))

        if condition is None:
            kernel = functools.partial(_te_kernel, act_fn=act_fn,
                                       post_act_fn=post_act_fn)
            in_specs = [sample_spec, w1_spec, b1_spec, w2_spec, b2_spec]
            args = (sample, params["w1"], params["b1"],
                    params["w2"], params["b2"])
        else:
            Ccond = condition.shape[1]
            cond_spec = _bspec((bb, Ccond), lambda i, j: (i, 0))
            wc_spec = _bspec((Ccond, Cin), lambda i, j: (0, 0), once)
            kernel = functools.partial(_te_cond_kernel, act_fn=act_fn,
                                       post_act_fn=post_act_fn)
            in_specs = [sample_spec, cond_spec, wc_spec,
                        w1_spec, b1_spec, w2_spec, b2_spec]
            args = (sample, condition, params["wc"],
                    params["w1"], params["b1"], params["w2"], params["b2"])
        return kernel, in_specs, out_spec, args

    def run(single_buffer_weights):
        kernel, in_specs, out_spec, args = build(single_buffer_weights)
        grid_spec = pltpu.PrefetchScalarGridSpec(
            num_scalar_prefetch=0,
            grid=grid,
            in_specs=in_specs,
            out_specs=out_spec,
        )
        return pl.pallas_call(
            kernel,
            out_shape=jax.ShapeDtypeStruct((pB, Dout), out_dtype),
            grid_spec=grid_spec,
            compiler_params=pltpu.CompilerParams(
                dimension_semantics=("parallel", "parallel")),
        )(*args)

    try:
        out = run(True)       # single-buffered grid-invariant weights
    except Exception:
        out = run(False)      # fallback: default double buffering
    return out[:B]


# ----------------------------------------------------------------------------
# Pure-JAX reference (mirror of the PyTorch forward), f32 math on same params.
# ----------------------------------------------------------------------------
def _reference(sample, params, *, act_fn="silu", post_act_fn=None,
               condition=None):
    f32 = jnp.float32
    x = sample.astype(f32)
    if condition is not None:
        x = x + condition.astype(f32) @ params["wc"].astype(f32)
    h = x @ params["w1"].astype(f32) + params["b1"].astype(f32)[0]
    h = _apply_act(h, act_fn)
    o = h @ params["w2"].astype(f32) + params["b2"].astype(f32)[0]
    if post_act_fn is not None:
        o = _apply_act(o, post_act_fn)
    return o.astype(sample.dtype)


if __name__ == "__main__":
    # Small shapes consistent with TimestepEmbedding (production: 320->1280->1280).
    B = 8            # batch of timesteps
    CIN = 32         # in_channels
    H = 128          # time_embed_dim
    DOUT = 128       # out_dim=None -> time_embed_dim_out == time_embed_dim
    CCOND = 16       # cond_proj_dim

    key = jax.random.PRNGKey(0)
    ks = jax.random.split(key, 8)

    params_f32 = {
        # Linear weights pre-transposed to (in, out); biases as (1, D) tiles.
        "w1": 0.05 * jax.random.normal(ks[0], (CIN, H), jnp.float32),
        "b1": 0.05 * jax.random.normal(ks[1], (1, H), jnp.float32),
        "w2": 0.05 * jax.random.normal(ks[2], (H, DOUT), jnp.float32),
        "b2": 0.05 * jax.random.normal(ks[3], (1, DOUT), jnp.float32),
        "wc": 0.05 * jax.random.normal(ks[4], (CCOND, CIN), jnp.float32),
    }
    # bf16 MXU weights, f32 biases (mixed-precision recipe from the review).
    params = prepare_params(params_f32, weight_dtype=jnp.bfloat16)

    sample = jax.random.normal(ks[5], (B, CIN), jnp.float32)
    condition = jax.random.normal(ks[6], (B, CCOND), jnp.float32)

    # Path 1: no condition (cond_proj=None), default silu activation.
    out = jax.block_until_ready(
        timestep_embedding(sample, params, act_fn="silu"))
    ref = _reference(sample, params, act_fn="silu")
    np.testing.assert_allclose(np.asarray(out), np.asarray(ref),
                               atol=1e-2, rtol=1e-2)

    # Path 2: with condition projection.
    out_c = jax.block_until_ready(
        timestep_embedding(sample, params, act_fn="silu", condition=condition))
    ref_c = _reference(sample, params, act_fn="silu", condition=condition)
    np.testing.assert_allclose(np.asarray(out_c), np.asarray(ref_c),
                               atol=1e-2, rtol=1e-2)

    print("KERNEL_OK")
</pallas_src>

<mosaic_0001>
module attributes {stable_mosaic.version = 11 : i64} {
  func.func @_te_kernel(%arg0: i32, %arg1: i32, %arg2: memref<8x32xf32, #tpu.memory_space<vmem>>, %arg3: memref<32x128xbf16, #tpu.memory_space<vmem>>, %arg4: memref<1x128xf32, #tpu.memory_space<vmem>>, %arg5: memref<128x128xbf16, #tpu.memory_space<vmem>>, %arg6: memref<1x128xf32, #tpu.memory_space<vmem>>, %arg7: memref<8x128xf32, #tpu.memory_space<vmem>>) attributes {dimension_semantics = [#tpu.dimension_semantics<parallel>, #tpu.dimension_semantics<parallel>], iteration_bounds = array<i64: 1, 1>, scalar_prefetch = 0 : i64, scratch_operands = 0 : i64, tpu.core_type = #tpu.core_type<tc>, window_params = [{transform_indices = @transform_0, window_bounds = array<i64: 8, 32>}, {pipeline_mode = #tpu.pipeline_mode<synchronous>, transform_indices = @transform_1, window_bounds = array<i64: 32, 128>}, {pipeline_mode = #tpu.pipeline_mode<synchronous>, transform_indices = @transform_2, window_bounds = array<i64: 1, 128>}, {pipeline_mode = #tpu.pipeline_mode<synchronous>, transform_indices = @transform_3, window_bounds = array<i64: 128, 128>}, {pipeline_mode = #tpu.pipeline_mode<synchronous>, transform_indices = @transform_4, window_bounds = array<i64: 1, 128>}, {transform_indices = @transform_5, window_bounds = array<i64: 8, 128>}]} {
    %c0 = arith.constant 0 : index
    %c0_0 = arith.constant 0 : index
    %0 = vector.load %arg2[%c0, %c0_0] : memref<8x32xf32, #tpu.memory_space<vmem>>, vector<8x32xf32>
    %1 = arith.truncf %0 : vector<8x32xf32> to vector<8x32xbf16>
    %c0_1 = arith.constant 0 : index
    %c0_2 = arith.constant 0 : index
    %2 = vector.load %arg3[%c0_1, %c0_2] : memref<32x128xbf16, #tpu.memory_space<vmem>>, vector<32x128xbf16>
    %cst = arith.constant dense<0.000000e+00> : vector<8x128xf32>
    %3 = tpu.matmul %1, %2, %cst {dimension_numbers = #tpu.dot_dimension_numbers<[1], [0], [0], [1], [0, 0, 1, 1], [], []>} : vector<8x32xbf16>, vector<32x128xbf16>, vector<8x128xf32> -> vector<8x128xf32>
    %c0_3 = arith.constant 0 : index
    %c0_4 = arith.constant 0 : index
    %4 = vector.load %arg4[%c0_3, %c0_4] : memref<1x128xf32, #tpu.memory_space<vmem>>, vector<1x128xf32>
    %5 = vector.broadcast %4 : vector<1x128xf32> to vector<8x128xf32>
    %6 = arith.addf %3, %5 : vector<8x128xf32>
    %7 = arith.negf %6 : vector<8x128xf32>
    %8 = math.exp %7 : vector<8x128xf32>
    %cst_5 = arith.constant 1.000000e+00 : f32
    %9 = vector.broadcast %cst_5 : f32 to vector<8x128xf32>
    %10 = arith.addf %9, %8 : vector<8x128xf32>
    %11 = arith.divf %9, %10 : vector<8x128xf32>
    %12 = arith.mulf %6, %11 : vector<8x128xf32>
    %13 = arith.truncf %12 : vector<8x128xf32> to vector<8x128xbf16>
    %c0_6 = arith.constant 0 : index
    %c0_7 = arith.constant 0 : index
    %14 = vector.load %arg5[%c0_6, %c0_7] : memref<128x128xbf16, #tpu.memory_space<vmem>>, vector<128x128xbf16>
    %cst_8 = arith.constant dense<0.000000e+00> : vector<8x128xf32>
    %15 = tpu.matmul %13, %14, %cst_8 {dimension_numbers = #tpu.dot_dimension_numbers<[1], [0], [0], [1], [0, 0, 1, 1], [], []>} : vector<8x128xbf16>, vector<128x128xbf16>, vector<8x128xf32> -> vector<8x128xf32>
    %c0_9 = arith.constant 0 : index
    %c0_10 = arith.constant 0 : index
    %16 = vector.load %arg6[%c0_9, %c0_10] : memref<1x128xf32, #tpu.memory_space<vmem>>, vector<1x128xf32>
    %17 = vector.broadcast %16 : vector<1x128xf32> to vector<8x128xf32>
    %18 = arith.addf %15, %17 : vector<8x128xf32>
    %c0_11 = arith.constant 0 : index
    %c0_12 = arith.constant 0 : index
    %19 = vector.load %arg7[%c0_11, %c0_12] : memref<8x128xf32, #tpu.memory_space<vmem>>, vector<8x128xf32>
    tpu.vector_store %arg7[%c0_11, %c0_12], %18 {strides = array<i32>} : memref<8x128xf32, #tpu.memory_space<vmem>>, vector<8x128xf32>,
    return
  }
  func.func @transform_0(%arg0: i32, %arg1: i32) -> (i32, i32) {
    %c0_i32 = arith.constant 0 : i32
    %c0_i32_0 = arith.constant 0 : i32
    return %arg0, %c0_i32 : i32, i32
  }
  func.func @transform_1(%arg0: i32, %arg1: i32) -> (i32, i32) {
    %c0_i32 = arith.constant 0 : i32
    %c0_i32_0 = arith.constant 0 : i32
    %c0_i32_1 = arith.constant 0 : i32
    return %c0_i32, %c0_i32_0 : i32, i32
  }
  func.func @transform_2(%arg0: i32, %arg1: i32) -> (i32, i32) {
    %c0_i32 = arith.constant 0 : i32
    %c0_i32_0 = arith.constant 0 : i32
    %c0_i32_1 = arith.constant 0 : i32
    return %c0_i32, %c0_i32_0 : i32, i32
  }
  func.func @transform_3(%arg0: i32, %arg1: i32) -> (i32, i32) {
    %c0_i32 = arith.constant 0 : i32
    %c0_i32_0 = arith.constant 0 : i32
    return %c0_i32, %arg1 : i32, i32
  }
  func.func @transform_4(%arg0: i32, %arg1: i32) -> (i32, i32) {
    %c0_i32 = arith.constant 0 : i32
    %c0_i32_0 = arith.constant 0 : i32
    return %c0_i32, %arg1 : i32, i32
  }
  func.func @transform_5(%arg0: i32, %arg1: i32) -> (i32, i32) {
    %c0_i32 = arith.constant 0 : i32
    return %arg0, %arg1 : i32, i32
  }
}

module attributes {stable_mosaic.version = 11 : i64} {
  func.func @_te_kernel(%arg0: i32, %arg1: i32, %arg2: memref<8x32xf32, #tpu.memory_space<vmem>>, %arg3: memref<32x128xbf16, #tpu.memory_space<vmem>>, %arg4: memref<1x128xf32, #tpu.memory_space<vmem>>, %arg5: memref<128x128xbf16, #tpu.memory_space<vmem>>, %arg6: memref<1x128xf32, #tpu.memory_space<vmem>>, %arg7: memref<8x128xf32, #tpu.memory_space<vmem>>) attributes {dimension_semantics = [#tpu.dimension_semantics<parallel>, #tpu.dimension_semantics<parallel>], iteration_bounds = array<i64: 1, 1>, scalar_prefetch = 0 : i64, scratch_operands = 0 : i64, tpu.core_type = #tpu.core_type<tc>, window_params = [{transform_indices = @transform_0, window_bounds = array<i64: 8, 32>}, {pipeline_mode = #tpu.pipeline_mode<synchronous>, transform_indices = @transform_1, window_bounds = array<i64: 32, 128>}, {pipeline_mode = #tpu.pipeline_mode<synchronous>, transform_indices = @transform_2, window_bounds = array<i64: 1, 128>}, {transform_indices = @transform_3, window_bounds = array<i64: 128, 128>}, {transform_indices = @transform_4, window_bounds = array<i64: 1, 128>}, {transform_indices = @transform_5, window_bounds = array<i64: 8, 128>}]} {
    %c0 = arith.constant 0 : index
    %c0_0 = arith.constant 0 : index
    %0 = vector.load %arg2[%c0, %c0_0] : memref<8x32xf32, #tpu.memory_space<vmem>>, vector<8x32xf32>
    %1 = arith.truncf %0 : vector<8x32xf32> to vector<8x32xbf16>
    %c0_1 = arith.constant 0 : index
    %c0_2 = arith.constant 0 : index
    %2 = vector.load %arg3[%c0_1, %c0_2] : memref<32x128xbf16, #tpu.memory_space<vmem>>, vector<32x128xbf16>
    %cst = arith.constant dense<0.000000e+00> : vector<8x128xf32>
    %3 = tpu.matmul %1, %2, %cst {dimension_numbers = #tpu.dot_dimension_numbers<[1], [0], [0], [1], [0, 0, 1, 1], [], []>} : vector<8x32xbf16>, vector<32x128xbf16>, vector<8x128xf32> -> vector<8x128xf32>
    %c0_3 = arith.constant 0 : index
    %c0_4 = arith.constant 0 : index
    %4 = vector.load %arg4[%c0_3, %c0_4] : memref<1x128xf32, #tpu.memory_space<vmem>>, vector<1x128xf32>
    %5 = vector.broadcast %4 : vector<1x128xf32> to vector<8x128xf32>
    %6 = arith.addf %3, %5 : vector<8x128xf32>
    %7 = arith.negf %6 : vector<8x128xf32>
    %8 = math.exp %7 : vector<8x128xf32>
    %cst_5 = arith.constant 1.000000e+00 : f32
    %9 = vector.broadcast %cst_5 : f32 to vector<8x128xf32>
    %10 = arith.addf %9, %8 : vector<8x128xf32>
    %11 = arith.divf %9, %10 : vector<8x128xf32>
    %12 = arith.mulf %6, %11 : vector<8x128xf32>
    %13 = arith.truncf %12 : vector<8x128xf32> to vector<8x128xbf16>
    %c0_6 = arith.constant 0 : index
    %c0_7 = arith.constant 0 : index
    %14 = vector.load %arg5[%c0_6, %c0_7] : memref<128x128xbf16, #tpu.memory_space<vmem>>, vector<128x128xbf16>
    %cst_8 = arith.constant dense<0.000000e+00> : vector<8x128xf32>
    %15 = tpu.matmul %13, %14, %cst_8 {dimension_numbers = #tpu.dot_dimension_numbers<[1], [0], [0], [1], [0, 0, 1, 1], [], []>} : vector<8x128xbf16>, vector<128x128xbf16>, vector<8x128xf32> -> vector<8x128xf32>
    %c0_9 = arith.constant 0 : index
    %c0_10 = arith.constant 0 : index
    %16 = vector.load %arg6[%c0_9, %c0_10] : memref<1x128xf32, #tpu.memory_space<vmem>>, vector<1x128xf32>
    %17 = vector.broadcast %16 : vector<1x128xf32> to vector<8x128xf32>
    %18 = arith.addf %15, %17 : vector<8x128xf32>
    %c0_11 = arith.constant 0 : index
    %c0_12 = arith.constant 0 : index
    %19 = vector.load %arg7[%c0_11, %c0_12] : memref<8x128xf32, #tpu.memory_space<vmem>>, vector<8x128xf32>
    tpu.vector_store %arg7[%c0_11, %c0_12], %18 {strides = array<i32>} : memref<8x128xf32, #tpu.memory_space<vmem>>, vector<8x128xf32>,
    return
  }
  func.func @transform_0(%arg0: i32, %arg1: i32) -> (i32, i32) {
    %c0_i32 = arith.constant 0 : i32
    %c0_i32_0 = arith.constant 0 : i32
    return %arg0, %c0_i32 : i32, i32
  }
  func.func @transform_1(%arg0: i32, %arg1: i32) -> (i32, i32) {
    %c0_i32 = arith.constant 0 : i32
    %c0_i32_0 = arith.constant 0 : i32
    %c0_i32_1 = arith.constant 0 : i32
    return %c0_i32, %c0_i32_0 : i32, i32
  }
  func.func @transform_2(%arg0: i32, %arg1: i32) -> (i32, i32) {
    %c0_i32 = arith.constant 0 : i32
    %c0_i32_0 = arith.constant 0 : i32
    %c0_i32_1 = arith.constant 0 : i32
    return %c0_i32, %c0_i32_0 : i32, i32
  }
  func.func @transform_3(%arg0: i32, %arg1: i32) -> (i32, i32) {
    %c0_i32 = arith.constant 0 : i32
    %c0_i32_0 = arith.constant 0 : i32
    return %c0_i32, %arg1 : i32, i32
  }
  func.func @transform_4(%arg0: i32, %arg1: i32) -> (i32, i32) {
    %c0_i32 = arith.constant 0 : i32
    %c0_i32_0 = arith.constant 0 : i32
    return %c0_i32, %arg1 : i32, i32
  }
  func.func @transform_5(%arg0: i32, %arg1: i32) -> (i32, i32) {
    %c0_i32 = arith.constant 0 : i32
    return %arg0, %arg1 : i32, i32
  }
}

</mosaic_0001>

<llo_original>
// kernel: tpu_custom_call.1
$region0: #{tpu_custom_call.1}
  #allocation0 [shape = 'u32[]', space=smem, size = 0x4, offset = 0x4, fixed_abs, tag = 'smem constant byte address 0x4 - core index']
  #allocation1 [shape = 'u32[144,128]{1,0:T(1,128)}', space=vmem, size = 0x12000, scoped, tag = 'internal scratch']
  %s0 = inlined_call_operand.hbm [shape: f32[8,32], index: 0, kind: input, shape index: {}]
  %s1 = inlined_call_operand.hbm [shape: bf16[32,128], index: 1, kind: input, shape index: {}]
  %s2 = inlined_call_operand.vmem [shape: f32[1,128], index: 2, kind: input, shape index: {}]
  %s3 = inlined_call_operand.hbm [shape: bf16[128,128], index: 3, kind: input, shape index: {}]
  %s4 = inlined_call_operand.vmem [shape: f32[1,128], index: 4, kind: input, shape index: {}]
  %s5 = inlined_call_operand.hbm [shape: f32[8,128], index: 5, kind: output, shape index: {}]
  %s6 = sld [smem:[#allocation0]]
  $region42: #{tpu_custom_call.1} parent=0
    _
  %s8 = ssub.s32 1, %s6
  %s9 = scalar_select 0, %s8, %s6
  $region1: #{tpu_custom_call.1} parent=0
    #allocation2 [shape = 'u8[4096]{0}', space=vmem, size = 0x1000, scoped, tag = 'input window, operand 0, single buffered']
    #allocation3 [shape = 's32[1]{0}', space=sflag, size = 0x4, scoped, tag = 'scoped memory for tpu_custom_call.1']
    #allocation4 [shape = 's32[1]{0}', space=sflag, size = 0x4, scoped, tag = 'scoped memory for tpu_custom_call.1']
    #allocation5 [shape = 'u8[8192]{0}', space=vmem, size = 0x2000, scoped, tag = 'input window, operand 1, single buffered']
    #allocation6 [shape = 's32[1]{0}', space=sflag, size = 0x4, scoped, tag = 'scoped memory for tpu_custom_call.1']
    #allocation7 [shape = 'u8[32768]{0}', space=vmem, size = 0x8000, scoped, tag = 'input window, operand 3, single buffered']
    #allocation8 [shape = 'u8[4096]{0}', space=vmem, size = 0x1000, scoped, tag = 'output window, operand 0, single buffered']
    %10 = vsyncpa [#allocation3], 0
    %11 = vsyncpa [#allocation6], 0
    %12 = vsyncpa [#allocation4], 0
    // Predicated region
    $region2: #{tpu_custom_call.1} parent=1 // pred_check
      _
    $region3: #{tpu_custom_call.1} parent=1 // pred_check_branch
      %14 = sbr.rel (0) target = $region5
    $region4: #{tpu_custom_call.1} parent=1 // pred_region
      %s16 = ssub.s32 128, 128
      %17 = vsyncadd [#allocation3], %s16
      %s19 = sshll.u32 [#allocation2], 4
      %s20 = int_to_ptr.vmem [resolvable:$true] %s19
      %22 = dma.hbm_to_vmem [thread:$0]  %s0, 128, %s20, [#allocation3]
    $region5: #{tpu_custom_call.1} parent=1 // pred_fallthru
      _
    // Predicated region
    $region6: #{tpu_custom_call.1} parent=1 // pred_check
      _
    $region7: #{tpu_custom_call.1} parent=1 // pred_check_branch
      %24 = sbr.rel (0) target = $region9
    $region8: #{tpu_custom_call.1} parent=1 // pred_region
      %s26 = ssub.s32 256, 256
      %27 = vsyncadd [#allocation6], %s26
      %s28 = sshll.u32 [#allocation5], 4
      %s29 = int_to_ptr.vmem [resolvable:$true] %s28
      %34 = dma.hbm_to_vmem [thread:$0]  %s1, 256, %s29, [#allocation6], 64, 64, 4
    $region9: #{tpu_custom_call.1} parent=1 // pred_fallthru
      _
    // Predicated region
    $region10: #{tpu_custom_call.1} parent=1 // pred_check
      _
    $region11: #{tpu_custom_call.1} parent=1 // pred_check_branch
      %36 = sbr.rel (0) target = $region13
    $region12: #{tpu_custom_call.1} parent=1 // pred_region
      _
    $region13: #{tpu_custom_call.1} parent=1 // pred_fallthru
      _
    // Predicated region
    $region14: #{tpu_custom_call.1} parent=1 // pred_check
      _
    $region15: #{tpu_custom_call.1} parent=1 // pred_check_branch
      %38 = sbr.rel (0) target = $region17
    $region16: #{tpu_custom_call.1} parent=1 // pred_region
      %s40 = ssub.s32 1024, 1024
      %41 = vsyncadd [#allocation6], %s40
      %s42 = sshll.u32 [#allocation7], 4
      %s43 = int_to_ptr.vmem [resolvable:$true] %s42
      %48 = dma.hbm_to_vmem [thread:$0]  %s3, 1024, %s43, [#allocation6], 64, 64, 4
    $region17: #{tpu_custom_call.1} parent=1 // pred_fallthru
      _
    // Predicated region
    $region18: #{tpu_custom_call.1} parent=1 // pred_check
      _
    $region19: #{tpu_custom_call.1} parent=1 // pred_check_branch
      %50 = sbr.rel (0) target = $region21
    $region20: #{tpu_custom_call.1} parent=1 // pred_region
      _
    $region21: #{tpu_custom_call.1} parent=1 // pred_fallthru
      _
    // Predicated region
    $region22: #{tpu_custom_call.1} parent=1 // pred_check
      _
    $region23: #{tpu_custom_call.1} parent=1 // pred_check_branch
      %52 = sbr.rel (0) target = $region25
    $region24: #{tpu_custom_call.1} parent=1 // pred_region
      %53 = dma.done [#allocation3], 128
    $region25: #{tpu_custom_call.1} parent=1 // pred_fallthru
      _
    // Predicated region
    $region26: #{tpu_custom_call.1} parent=1 // pred_check
      _
    $region27: #{tpu_custom_call.1} parent=1 // pred_check_branch
      %55 = sbr.rel (0) target = $region29
    $region28: #{tpu_custom_call.1} parent=1 // pred_region
      %56 = dma.done [#allocation6], 256
    $region29: #{tpu_custom_call.1} parent=1 // pred_fallthru
      _
    // Predicated region
    $region30: #{tpu_custom_call.1} parent=1 // pred_check
      _
    $region31: #{tpu_custom_call.1} parent=1 // pred_check_branch
      %58 = sbr.rel (0) target = $region33
    $region32: #{tpu_custom_call.1} parent=1 // pred_region
      %59 = dma.done [#allocation6], 1024
    $region33: #{tpu_custom_call.1} parent=1 // pred_fallthru
      _
    %v61 = vld [vmem:[#allocation2] sm:$0xff]
    %v62 = vpack.c.bf16 %v61, %v61
    %v63 = vld [vmem:[#allocation5] sm:$0xf]
    %v64 = vld [vmem:[#allocation5 + $0x4] sm:$0xf]
    %v65 = vld [vmem:[#allocation5 + $0x8] sm:$0xf]
    %v66 = vld [vmem:[#allocation5 + $0xc] sm:$0xf]
    %v67 = vld [vmem:[%s2] sm:$0x1]
    %v69 = vlaneseq
    %v70 = vshrl.u32 %v69, 7
    %v71 = vsub.s32 0, %v70
    %v72 = vrot.slane %v67, %v71
    %v78 = vunpack.c.l.b16 %v63
    %v79 = vunpack.c.l.b16 %v64
    %v80 = vunpack.c.l.b16 %v65
    %v81 = vunpack.c.l.b16 %v66
    %v82 = vpack.c.b16 %v79, %v78
    %v83 = vpack.c.b16 %v81, %v80
    %vm86 = vcmask 261120
    %v88 = vsel %vm86, %v62, 0
    %90 = vmatprep.subr.bf16.mxu0 0
    %91 = vmatpush1.bf16.msra.mxu0 %v82
    %92 = vmatprep.subr.bf16.mxu0 0
    %93 = vmatpush1.bf16.msra.mxu0 %v83
    %94 = vmatprep.subr.bf16.mxu0 0
    %95 = vmatpush1.bf16.msra.mxu0 0
    %96 = vmatprep.subr.bf16.mxu0 0
    %97 = vmatpush1.bf16.msra.mxu0 0
    %98 = vmatprep.subr.bf16.mxu0 0
    %99 = vmatpush1.bf16.msra.mxu0 0
    %100 = vmatprep.subr.bf16.mxu0 0
    %101 = vmatpush1.bf16.msra.mxu0 0
    %102 = vmatprep.subr.bf16.mxu0 0
    %103 = vmatpush1.bf16.msra.mxu0 0
    %104 = vmatprep.subr.bf16.mxu0 0
    %105 = vmatpush1.bf16.msra.mxu0 0
    %106 = vmatprep.subr.bf16.mxu0 0
    %107 = vmatpush1.bf16.msra.mxu0 0
    %108 = vmatprep.subr.bf16.mxu0 0
    %109 = vmatpush1.bf16.msra.mxu0 0
    %110 = vmatprep.subr.bf16.mxu0 0
    %111 = vmatpush1.bf16.msra.mxu0 0
    %112 = vmatprep.subr.bf16.mxu0 0
    %113 = vmatpush1.bf16.msra.mxu0 0
    %114 = vmatprep.subr.bf16.mxu0 0
    %115 = vmatpush1.bf16.msra.mxu0 0
    %116 = vmatprep.subr.bf16.mxu0 0
    %117 = vmatpush1.bf16.msra.mxu0 0
    %118 = vmatprep.subr.bf16.mxu0 0
    %119 = vmatpush1.bf16.msra.mxu0 0
    %120 = vmatprep.subr.bf16.mxu0 0
    %121 = vmatpush1.bf16.msra.mxu0 0
    %122 = vmatprep.mubr.bf16.mxu0 0
    %123 = vmatmul.mubr.bf16.gmra.mrb[0].mxu0 %v88
    %v124 = vpop.f32.mrb[0].mxu0
    %v125 = vadd.f32 %v72, %v124
    %v126 = vpop.f32.mrb[0].mxu0
    %v127 = vpop.f32.mrb[0].mxu0
    %v128 = vpop.f32.mrb[0].mxu0
    %129 = vdwg.mxu0
    %v130 = vxor.u32 %v125, 2147483648
    %v131 = vmul.f32 %v130, 1.442695
    %v132 = vpow.pop %v131
    %v133 = vadd.f32 %v132, 1.0
    %v134 = vrcp.pop %v133
    %v135 = vmul.f32 1.0, %v134
    %v136 = vmul.f32 %v125, %v135
    %v137 = vpack.c.bf16 %v136, %v136
    %v138 = vld [vmem:[#allocation7] sm:$0xf]
    %v139 = vld [vmem:[#allocation7 + $0x4] sm:$0xf]
    %v140 = vld [vmem:[#allocation7 + $0x8] sm:$0xf]
    %v141 = vld [vmem:[#allocation7 + $0xc] sm:$0xf]
    %v142 = vld [vmem:[#allocation7 + $0x10] sm:$0xf]
    %v143 = vld [vmem:[#allocation7 + $0x14] sm:$0xf]
    %v144 = vld [vmem:[#allocation7 + $0x18] sm:$0xf]
    %v145 = vld [vmem:[#allocation7 + $0x1c] sm:$0xf]
    %v146 = vld [vmem:[#allocation7 + $0x20] sm:$0xf]
    %v147 = vld [vmem:[#allocation7 + $0x24] sm:$0xf]
    %v148 = vld [vmem:[#allocation7 + $0x28] sm:$0xf]
    %v149 = vld [vmem:[#allocation7 + $0x2c] sm:$0xf]
    %v150 = vld [vmem:[#allocation7 + $0x30] sm:$0xf]
    %v151 = vld [vmem:[#allocation7 + $0x34] sm:$0xf]
    %v152 = vld [vmem:[#allocation7 + $0x38] sm:$0xf]
    %v153 = vld [vmem:[#allocation7 + $0x3c] sm:$0xf]
    %v154 = vld [vmem:[%s4] sm:$0x1]
    %v156 = vlaneseq
    %v157 = vshrl.u32 %v156, 7
    %v158 = vsub.s32 0, %v157
    %v159 = vrot.slane %v154, %v158
    %v177 = vunpack.c.l.b16 %v138
    %v178 = vunpack.c.l.b16 %v139
    %v179 = vunpack.c.l.b16 %v140
    %v180 = vunpack.c.l.b16 %v141
    %v181 = vunpack.c.l.b16 %v142
    %v182 = vunpack.c.l.b16 %v143
    %v183 = vunpack.c.l.b16 %v144
    %v184 = vunpack.c.l.b16 %v145
    %v185 = vunpack.c.l.b16 %v146
    %v186 = vunpack.c.l.b16 %v147
    %v187 = vunpack.c.l.b16 %v148
    %v188 = vunpack.c.l.b16 %v149
    %v189 = vunpack.c.l.b16 %v150
    %v190 = vunpack.c.l.b16 %v151
    %v191 = vunpack.c.l.b16 %v152
    %v192 = vunpack.c.l.b16 %v153
    %v193 = vpack.c.b16 %v178, %v177
    %v194 = vpack.c.b16 %v180, %v179
    %v195 = vpack.c.b16 %v182, %v181
    %v196 = vpack.c.b16 %v184, %v183
    %v197 = vpack.c.b16 %v186, %v185
    %v198 = vpack.c.b16 %v188, %v187
    %v199 = vpack.c.b16 %v190, %v189
    %v200 = vpack.c.b16 %v192, %v191
    %209 = vmatprep.subr.bf16.mxu0 0
    %210 = vmatpush1.bf16.msra.mxu0 %v193
    %211 = vmatprep.subr.bf16.mxu0 0
    %212 = vmatpush1.bf16.msra.mxu0 %v194
    %213 = vmatprep.subr.bf16.mxu0 0
    %214 = vmatpush1.bf16.msra.mxu0 %v195
    %215 = vmatprep.subr.bf16.mxu0 0
    %216 = vmatpush1.bf16.msra.mxu0 %v196
    %217 = vmatprep.subr.bf16.mxu0 0
    %218 = vmatpush1.bf16.msra.mxu0 %v197
    %219 = vmatprep.subr.bf16.mxu0 0
    %220 = vmatpush1.bf16.msra.mxu0 %v198
    %221 = vmatprep.subr.bf16.mxu0 0
    %222 = vmatpush1.bf16.msra.mxu0 %v199
    %223 = vmatprep.subr.bf16.mxu0 0
    %224 = vmatpush1.bf16.msra.mxu0 %v200
    %225 = vmatprep.subr.bf16.mxu0 0
    %226 = vmatpush1.bf16.msra.mxu0 0
    %227 = vmatprep.subr.bf16.mxu0 0
    %228 = vmatpush1.bf16.msra.mxu0 0
    %229 = vmatprep.subr.bf16.mxu0 0
    %230 = vmatpush1.bf16.msra.mxu0 0
    %231 = vmatprep.subr.bf16.mxu0 0
    %232 = vmatpush1.bf16.msra.mxu0 0
    %233 = vmatprep.subr.bf16.mxu0 0
    %234 = vmatpush1.bf16.msra.mxu0 0
    %235 = vmatprep.subr.bf16.mxu0 0
    %236 = vmatpush1.bf16.msra.mxu0 0
    %237 = vmatprep.subr.bf16.mxu0 0
    %238 = vmatpush1.bf16.msra.mxu0 0
    %239 = vmatprep.subr.bf16.mxu0 0
    %240 = vmatpush1.bf16.msra.mxu0 0
    %241 = vmatprep.mubr.bf16.mxu0 0
    %242 = vmatmul.mubr.bf16.gmra.mrb[0].mxu0 %v137
    %v243 = vpop.f32.mrb[0].mxu0
    %v244 = vadd.f32 %v159, %v243
    %v245 = vpop.f32.mrb[0].mxu0
    %v246 = vpop.f32.mrb[0].mxu0
    %v247 = vpop.f32.mrb[0].mxu0
    %248 = vdwg.mxu0
    %249 = vst [vmem:[#allocation8] sm:$0xff] %v244
    // Predicated region
    $region34: #{tpu_custom_call.1} parent=1 // pred_check
      _
    $region35: #{tpu_custom_call.1} parent=1 // pred_check_branch
      %251 = sbr.rel (0) target = $region37
    $region36: #{tpu_custom_call.1} parent=1 // pred_region
      %s253 = ssub.s32 128, 128
      %254 = vsyncadd [#allocation4], %s253
      %s256 = sshll.u32 [#allocation8], 4
      %s257 = int_to_ptr.vmem [resolvable:$true] %s256
      %259 = dma.vmem_to_hbm [thread:$0]  %s257, 128, %s5, [#allocation4]
    $region37: #{tpu_custom_call.1} parent=1 // pred_fallthru
      _
    // Predicated region
    $region38: #{tpu_custom_call.1} parent=1 // pred_check
      _
    $region39: #{tpu_custom_call.1} parent=1 // pred_check_branch
      %261 = sbr.rel (0) target = $region41
    $region40: #{tpu_custom_call.1} parent=1 // pred_region
      %262 = dma.done [#allocation4], 128
    $region41: #{tpu_custom_call.1} parent=1 // pred_fallthru
      _
    %263 = vsyncpa [#allocation3], 1
    %264 = vsyncpa [#allocation6], 1
    %265 = vsyncpa [#allocation4], 1

// kernel: tpu_custom_call.1
$region0: #{tpu_custom_call.1}
  #allocation0 [shape = 'u32[]', space=smem, size = 0x4, offset = 0x4, fixed_abs, tag = 'smem constant byte address 0x4 - core index']
  #allocation1 [shape = 'u32[144,128]{1,0:T(1,128)}', space=vmem, size = 0x12000, scoped, tag = 'internal scratch']
  %s0 = inlined_call_operand.hbm [shape: f32[8,32], index: 0, kind: input, shape index: {}]
  %s1 = inlined_call_operand.hbm [shape: bf16[32,128], index: 1, kind: input, shape index: {}]
  %s2 = inlined_call_operand.vmem [shape: f32[1,128], index: 2, kind: input, shape index: {}]
  %s3 = inlined_call_operand.hbm [shape: bf16[128,128], index: 3, kind: input, shape index: {}]
  %s4 = inlined_call_operand.vmem [shape: f32[1,128], index: 4, kind: input, shape index: {}]
  %s5 = inlined_call_operand.hbm [shape: f32[8,128], index: 5, kind: output, shape index: {}]
  %s6 = sld [smem:[#allocation0]]
  $region42: #{tpu_custom_call.1} parent=0
    _
  %s8 = ssub.s32 1, %s6
  %s9 = scalar_select 0, %s8, %s6
  $region1: #{tpu_custom_call.1} parent=0
    #allocation2 [shape = 'u8[4096]{0}', space=vmem, size = 0x1000, scoped, tag = 'input window, operand 0, single buffered']
    #allocation3 [shape = 's32[1]{0}', space=sflag, size = 0x4, scoped, tag = 'scoped memory for tpu_custom_call.1']
    #allocation4 [shape = 's32[1]{0}', space=sflag, size = 0x4, scoped, tag = 'scoped memory for tpu_custom_call.1']
    #allocation5 [shape = 'u8[8192]{0}', space=vmem, size = 0x2000, scoped, tag = 'input window, operand 1, single buffered']
    #allocation6 [shape = 's32[1]{0}', space=sflag, size = 0x4, scoped, tag = 'scoped memory for tpu_custom_call.1']
    #allocation7 [shape = 'u8[32768]{0}', space=vmem, size = 0x8000, scoped, tag = 'input window, operand 3, single buffered']
    #allocation8 [shape = 'u8[4096]{0}', space=vmem, size = 0x1000, scoped, tag = 'output window, operand 0, single buffered']
    %10 = vsyncpa [#allocation3], 0
    %11 = vsyncpa [#allocation6], 0
    %12 = vsyncpa [#allocation4], 0
    // Predicated region
    $region2: #{tpu_custom_call.1} parent=1 // pred_check
      _
    $region3: #{tpu_custom_call.1} parent=1 // pred_check_branch
      %14 = sbr.rel (0) target = $region5
    $region4: #{tpu_custom_call.1} parent=1 // pred_region
      %s16 = ssub.s32 128, 128
      %17 = vsyncadd [#allocation3], %s16
      %s19 = sshll.u32 [#allocation2], 4
      %s20 = int_to_ptr.vmem [resolvable:$true] %s19
      %22 = dma.hbm_to_vmem [thread:$0]  %s0, 128, %s20, [#allocation3]
    $region5: #{tpu_custom_call.1} parent=1 // pred_fallthru
      _
    // Predicated region
    $region6: #{tpu_custom_call.1} parent=1 // pred_check
      _
    $region7: #{tpu_custom_call.1} parent=1 // pred_check_branch
      %24 = sbr.rel (0) target = $region9
    $region8: #{tpu_custom_call.1} parent=1 // pred_region
      %s26 = ssub.s32 256, 256
      %27 = vsyncadd [#allocation6], %s26
      %s28 = sshll.u32 [#allocation5], 4
      %s29 = int_to_ptr.vmem [resolvable:$true] %s28
      %34 = dma.hbm_to_vmem [thread:$0]  %s1, 256, %s29, [#allocation6], 64, 64, 4
    $region9: #{tpu_custom_call.1} parent=1 // pred_fallthru
      _
    // Predicated region
    $region10: #{tpu_custom_call.1} parent=1 // pred_check
      _
    $region11: #{tpu_custom_call.1} parent=1 // pred_check_branch
      %36 = sbr.rel (0) target = $region13
    $region12: #{tpu_custom_call.1} parent=1 // pred_region
      _
    $region13: #{tpu_custom_call.1} parent=1 // pred_fallthru
      _
    // Predicated region
    $region14: #{tpu_custom_call.1} parent=1 // pred_check
      _
    $region15: #{tpu_custom_call.1} parent=1 // pred_check_branch
      %38 = sbr.rel (0) target = $region17
    $region16: #{tpu_custom_call.1} parent=1 // pred_region
      %s40 = ssub.s32 1024, 1024
      %41 = vsyncadd [#allocation6], %s40
      %s42 = sshll.u32 [#allocation7], 4
      %s43 = int_to_ptr.vmem [resolvable:$true] %s42
      %48 = dma.hbm_to_vmem [thread:$0]  %s3, 1024, %s43, [#allocation6], 64, 64, 4
    $region17: #{tpu_custom_call.1} parent=1 // pred_fallthru
      _
    // Predicated region
    $region18: #{tpu_custom_call.1} parent=1 // pred_check
      _
    $region19: #{tpu_custom_call.1} parent=1 // pred_check_branch
      %50 = sbr.rel (0) target = $region21
    $region20: #{tpu_custom_call.1} parent=1 // pred_region
      _
    $region21: #{tpu_custom_call.1} parent=1 // pred_fallthru
      _
    // Predicated region
    $region22: #{tpu_custom_call.1} parent=1 // pred_check
      _
    $region23: #{tpu_custom_call.1} parent=1 // pred_check_branch
      %52 = sbr.rel (0) target = $region25
    $region24: #{tpu_custom_call.1} parent=1 // pred_region
      %53 = dma.done [#allocation3], 128
    $region25: #{tpu_custom_call.1} parent=1 // pred_fallthru
      _
    // Predicated region
    $region26: #{tpu_custom_call.1} parent=1 // pred_check
      _
    $region27: #{tpu_custom_call.1} parent=1 // pred_check_branch
      %55 = sbr.rel (0) target = $region29
    $region28: #{tpu_custom_call.1} parent=1 // pred_region
      %56 = dma.done [#allocation6], 256
    $region29: #{tpu_custom_call.1} parent=1 // pred_fallthru
      _
    // Predicated region
    $region30: #{tpu_custom_call.1} parent=1 // pred_check
      _
    $region31: #{tpu_custom_call.1} parent=1 // pred_check_branch
      %58 = sbr.rel (0) target = $region33
    $region32: #{tpu_custom_call.1} parent=1 // pred_region
      %59 = dma.done [#allocation6], 1024
    $region33: #{tpu_custom_call.1} parent=1 // pred_fallthru
      _
    %v61 = vld [vmem:[#allocation2] sm:$0xff]
    %v62 = vpack.c.bf16 %v61, %v61
    %v63 = vld [vmem:[#allocation5] sm:$0xf]
    %v64 = vld [vmem:[#allocation5 + $0x4] sm:$0xf]
    %v65 = vld [vmem:[#allocation5 + $0x8] sm:$0xf]
    %v66 = vld [vmem:[#allocation5 + $0xc] sm:$0xf]
    %v67 = vld [vmem:[%s2] sm:$0x1]
    %v69 = vlaneseq
    %v70 = vshrl.u32 %v69, 7
    %v71 = vsub.s32 0, %v70
    %v72 = vrot.slane %v67, %v71
    %v78 = vunpack.c.l.b16 %v63
    %v79 = vunpack.c.l.b16 %v64
    %v80 = vunpack.c.l.b16 %v65
    %v81 = vunpack.c.l.b16 %v66
    %v82 = vpack.c.b16 %v79, %v78
    %v83 = vpack.c.b16 %v81, %v80
    %vm86 = vcmask 261120
    %v88 = vsel %vm86, %v62, 0
    %90 = vmatprep.subr.bf16.mxu0 0
    %91 = vmatpush1.bf16.msra.mxu0 %v82
    %92 = vmatprep.subr.bf16.mxu0 0
    %93 = vmatpush1.bf16.msra.mxu0 %v83
    %94 = vmatprep.subr.bf16.mxu0 0
    %95 = vmatpush1.bf16.msra.mxu0 0
    %96 = vmatprep.subr.bf16.mxu0 0
    %97 = vmatpush1.bf16.msra.mxu0 0
    %98 = vmatprep.subr.bf16.mxu0 0
    %99 = vmatpush1.bf16.msra.mxu0 0
    %100 = vmatprep.subr.bf16.mxu0 0
    %101 = vmatpush1.bf16.msra.mxu0 0
    %102 = vmatprep.subr.bf16.mxu0 0
    %103 = vmatpush1.bf16.msra.mxu0 0
    %104 = vmatprep.subr.bf16.mxu0 0
    %105 = vmatpush1.bf16.msra.mxu0 0
    %106 = vmatprep.subr.bf16.mxu0 0
    %107 = vmatpush1.bf16.msra.mxu0 0
    %108 = vmatprep.subr.bf16.mxu0 0
    %109 = vmatpush1.bf16.msra.mxu0 0
    %110 = vmatprep.subr.bf16.mxu0 0
    %111 = vmatpush1.bf16.msra.mxu0 0
    %112 = vmatprep.subr.bf16.mxu0 0
    %113 = vmatpush1.bf16.msra.mxu0 0
    %114 = vmatprep.subr.bf16.mxu0 0
    %115 = vmatpush1.bf16.msra.mxu0 0
    %116 = vmatprep.subr.bf16.mxu0 0
    %117 = vmatpush1.bf16.msra.mxu0 0
    %118 = vmatprep.subr.bf16.mxu0 0
    %119 = vmatpush1.bf16.msra.mxu0 0
    %120 = vmatprep.subr.bf16.mxu0 0
    %121 = vmatpush1.bf16.msra.mxu0 0
    %122 = vmatprep.mubr.bf16.mxu0 0
    %123 = vmatmul.mubr.bf16.gmra.mrb[0].mxu0 %v88
    %v124 = vpop.f32.mrb[0].mxu0
    %v125 = vadd.f32 %v72, %v124
    %v126 = vpop.f32.mrb[0].mxu0
    %v127 = vpop.f32.mrb[0].mxu0
    %v128 = vpop.f32.mrb[0].mxu0
    %129 = vdwg.mxu0
    %v130 = vxor.u32 %v125, 2147483648
    %v131 = vmul.f32 %v130, 1.442695
    %v132 = vpow.pop %v131
    %v133 = vadd.f32 %v132, 1.0
    %v134 = vrcp.pop %v133
    %v135 = vmul.f32 1.0, %v134
    %v136 = vmul.f32 %v125, %v135
    %v137 = vpack.c.bf16 %v136, %v136
    %v138 = vld [vmem:[#allocation7] sm:$0xf]
    %v139 = vld [vmem:[#allocation7 + $0x4] sm:$0xf]
    %v140 = vld [vmem:[#allocation7 + $0x8] sm:$0xf]
    %v141 = vld [vmem:[#allocation7 + $0xc] sm:$0xf]
    %v142 = vld [vmem:[#allocation7 + $0x10] sm:$0xf]
    %v143 = vld [vmem:[#allocation7 + $0x14] sm:$0xf]
    %v144 = vld [vmem:[#allocation7 + $0x18] sm:$0xf]
    %v145 = vld [vmem:[#allocation7 + $0x1c] sm:$0xf]
    %v146 = vld [vmem:[#allocation7 + $0x20] sm:$0xf]
    %v147 = vld [vmem:[#allocation7 + $0x24] sm:$0xf]
    %v148 = vld [vmem:[#allocation7 + $0x28] sm:$0xf]
    %v149 = vld [vmem:[#allocation7 + $0x2c] sm:$0xf]
    %v150 = vld [vmem:[#allocation7 + $0x30] sm:$0xf]
    %v151 = vld [vmem:[#allocation7 + $0x34] sm:$0xf]
    %v152 = vld [vmem:[#allocation7 + $0x38] sm:$0xf]
    %v153 = vld [vmem:[#allocation7 + $0x3c] sm:$0xf]
    %v154 = vld [vmem:[%s4] sm:$0x1]
    %v156 = vlaneseq
    %v157 = vshrl.u32 %v156, 7
    %v158 = vsub.s32 0, %v157
    %v159 = vrot.slane %v154, %v158
    %v177 = vunpack.c.l.b16 %v138
    %v178 = vunpack.c.l.b16 %v139
    %v179 = vunpack.c.l.b16 %v140
    %v180 = vunpack.c.l.b16 %v141
    %v181 = vunpack.c.l.b16 %v142
    %v182 = vunpack.c.l.b16 %v143
    %v183 = vunpack.c.l.b16 %v144
    %v184 = vunpack.c.l.b16 %v145
    %v185 = vunpack.c.l.b16 %v146
    %v186 = vunpack.c.l.b16 %v147
    %v187 = vunpack.c.l.b16 %v148
    %v188 = vunpack.c.l.b16 %v149
    %v189 = vunpack.c.l.b16 %v150
    %v190 = vunpack.c.l.b16 %v151
    %v191 = vunpack.c.l.b16 %v152
    %v192 = vunpack.c.l.b16 %v153
    %v193 = vpack.c.b16 %v178, %v177
    %v194 = vpack.c.b16 %v180, %v179
    %v195 = vpack.c.b16 %v182, %v181
    %v196 = vpack.c.b16 %v184, %v183
    %v197 = vpack.c.b16 %v186, %v185
    %v198 = vpack.c.b16 %v188, %v187
    %v199 = vpack.c.b16 %v190, %v189
    %v200 = vpack.c.b16 %v192, %v191
    %209 = vmatprep.subr.bf16.mxu0 0
    %210 = vmatpush1.bf16.msra.mxu0 %v193
    %211 = vmatprep.subr.bf16.mxu0 0
    %212 = vmatpush1.bf16.msra.mxu0 %v194
    %213 = vmatprep.subr.bf16.mxu0 0
    %214 = vmatpush1.bf16.msra.mxu0 %v195
    %215 = vmatprep.subr.bf16.mxu0 0
    %216 = vmatpush1.bf16.msra.mxu0 %v196
    %217 = vmatprep.subr.bf16.mxu0 0
    %218 = vmatpush1.bf16.msra.mxu0 %v197
    %219 = vmatprep.subr.bf16.mxu0 0
    %220 = vmatpush1.bf16.msra.mxu0 %v198
    %221 = vmatprep.subr.bf16.mxu0 0
    %222 = vmatpush1.bf16.msra.mxu0 %v199
    %223 = vmatprep.subr.bf16.mxu0 0
    %224 = vmatpush1.bf16.msra.mxu0 %v200
    %225 = vmatprep.subr.bf16.mxu0 0
    %226 = vmatpush1.bf16.msra.mxu0 0
    %227 = vmatprep.subr.bf16.mxu0 0
    %228 = vmatpush1.bf16.msra.mxu0 0
    %229 = vmatprep.subr.bf16.mxu0 0
    %230 = vmatpush1.bf16.msra.mxu0 0
    %231 = vmatprep.subr.bf16.mxu0 0
    %232 = vmatpush1.bf16.msra.mxu0 0
    %233 = vmatprep.subr.bf16.mxu0 0
    %234 = vmatpush1.bf16.msra.mxu0 0
    %235 = vmatprep.subr.bf16.mxu0 0
    %236 = vmatpush1.bf16.msra.mxu0 0
    %237 = vmatprep.subr.bf16.mxu0 0
    %238 = vmatpush1.bf16.msra.mxu0 0
    %239 = vmatprep.subr.bf16.mxu0 0
    %240 = vmatpush1.bf16.msra.mxu0 0
    %241 = vmatprep.mubr.bf16.mxu0 0
    %242 = vmatmul.mubr.bf16.gmra.mrb[0].mxu0 %v137
    %v243 = vpop.f32.mrb[0].mxu0
    %v244 = vadd.f32 %v159, %v243
    %v245 = vpop.f32.mrb[0].mxu0
    %v246 = vpop.f32.mrb[0].mxu0
    %v247 = vpop.f32.mrb[0].mxu0
    %248 = vdwg.mxu0
    %249 = vst [vmem:[#allocation8] sm:$0xff] %v244
    // Predicated region
    $region34: #{tpu_custom_call.1} parent=1 // pred_check
      _
    $region35: #{tpu_custom_call.1} parent=1 // pred_check_branch
      %251 = sbr.rel (0) target = $region37
    $region36: #{tpu_custom_call.1} parent=1 // pred_region
      %s253 = ssub.s32 128, 128
      %254 = vsyncadd [#allocation4], %s253
      %s256 = sshll.u32 [#allocation8], 4
      %s257 = int_to_ptr.vmem [resolvable:$true] %s256
      %259 = dma.vmem_to_hbm [thread:$0]  %s257, 128, %s5, [#allocation4]
    $region37: #{tpu_custom_call.1} parent=1 // pred_fallthru
      _
    // Predicated region
    $region38: #{tpu_custom_call.1} parent=1 // pred_check
      _
    $region39: #{tpu_custom_call.1} parent=1 // pred_check_branch
      %261 = sbr.rel (0) target = $region41
    $region40: #{tpu_custom_call.1} parent=1 // pred_region
      %262 = dma.done [#allocation4], 128
    $region41: #{tpu_custom_call.1} parent=1 // pred_fallthru
      _
    %263 = vsyncpa [#allocation3], 1
    %264 = vsyncpa [#allocation6], 1
    %265 = vsyncpa [#allocation4], 1

</llo_original>
